<compile_context>
chip_gen: v6e
topology: v6e:2x2x1
jax: 0.10.0
libtpu: 0.0.40
codegen_flags: <defaults>
</compile_context>

<pallas_src>
import jax
import jax.numpy as jnp
from jax.experimental import pallas as pl
from jax.experimental.pallas import tpu as pltpu


# ----------------------------------------------------------------------------
# Kernel bodies
# ----------------------------------------------------------------------------

def _mlp(x, ctx, w1x, w1c, b1, w2, b2, w3, b3):
    """3-layer MLP with the context contribution folded into the first bias.

    concat([x, ctx]) @ W1 + b1 == x @ W1[:n_in] + (ctx @ W1[n_in:] + b1)
    """
    fused_b1 = jnp.dot(ctx, w1c, preferred_element_type=jnp.float32) + b1
    h = jnp.dot(x, w1x, preferred_element_type=jnp.float32)
    h = jnp.maximum(h + fused_b1, 0.0)
    h = jnp.dot(h, w2, preferred_element_type=jnp.float32)
    h = jnp.maximum(h + b2, 0.0)
    return jnp.dot(h, w3, preferred_element_type=jnp.float32) + b3


def cavia_single_kernel(x_ref, ctx_ref, w1x_ref, w1c_ref, b1_ref,
                        w2_ref, b2_ref, w3_ref, b3_ref, o_ref):
    """Gridless single-task forward: all operands are full-array VMEM blocks."""
    y = _mlp(x_ref[...], ctx_ref[...], w1x_ref[...], w1c_ref[...], b1_ref[...],
             w2_ref[...], b2_ref[...], w3_ref[...], b3_ref[...])
    o_ref[...] = y.astype(o_ref.dtype)


def cavia_task_kernel(x_ref, ctx_ref, w1x_ref, w1c_ref, b1_ref,
                      w2_ref, b2_ref, w3_ref, b3_ref, o_ref):
    """One grid step == one CAVIA task (leading size-1 task dim on x/ctx/out)."""
    y = _mlp(x_ref[0], ctx_ref[0], w1x_ref[...], w1c_ref[...], b1_ref[...],
             w2_ref[...], b2_ref[...], w3_ref[...], b3_ref[...])
    o_ref[0] = y.astype(o_ref.dtype)


# ----------------------------------------------------------------------------
# Wrappers
# ----------------------------------------------------------------------------

def _cost_estimate(n_tasks, B, n_in, C, h1, h2, n_out, *arrays):
    flops = 2 * n_tasks * (B * (n_in * h1 + h1 * h2 + h2 * n_out) + C * h1)
    bytes_accessed = sum(a.size * a.dtype.itemsize for a in arrays)
    bytes_accessed += n_tasks * B * n_out * 4  # output
    return pl.CostEstimate(flops=flops, transcendentals=0,
                           bytes_accessed=bytes_accessed)


def cavia_forward(x, context_params, params):
    """Single-task forward.  x: (B, n_in) f32, context_params: (C,) f32."""
    B, n_in = x.shape
    w1, b1 = params["w1"], params["b1"]
    w2, b2 = params["w2"], params["b2"]
    w3, b3 = params["w3"], params["b3"]
    C = w1.shape[0] - n_in
    h1, h2, n_out = w1.shape[1], w2.shape[1], w3.shape[1]

    w1_x = w1[:n_in]           # (n_in, h1)
    w1_c = w1[n_in:]           # (C, h1)
    ctx = context_params.reshape(1, C)

    cost = _cost_estimate(1, B, n_in, C, h1, h2, n_out,
                          x, ctx, w1_x, w1_c, b1, w2, b2, w3, b3)

    kernel = pl.pallas_call(
        cavia_single_kernel,
        out_shape=jax.ShapeDtypeStruct((B, n_out), x.dtype),
        in_specs=[pl.BlockSpec(memory_space=pltpu.MemorySpace.VMEM)] * 9,
        out_specs=pl.BlockSpec(memory_space=pltpu.MemorySpace.VMEM),
        cost_estimate=cost,
    )
    return kernel(x, ctx, w1_x, w1_c, b1, w2, b2, w3, b3)


def cavia_forward_tasks(xs, ctxs, params):
    """Batched multi-task forward (shared weights, per-task context).

    xs: (T, B, n_in) f32, ctxs: (T, C) f32  ->  (T, B, n_out) f32.
    One pallas_call, grid over tasks, "parallel" so v7x uses both TensorCores.
    """
    T, B, n_in = xs.shape
    w1, b1 = params["w1"], params["b1"]
    w2, b2 = params["w2"], params["b2"]
    w3, b3 = params["w3"], params["b3"]
    C = w1.shape[0] - n_in
    h1, h2, n_out = w1.shape[1], w2.shape[1], w3.shape[1]

    w1_x = w1[:n_in]
    w1_c = w1[n_in:]
    ctxs3 = ctxs.reshape(T, 1, C)   # keep last-two block dims == full dims

    cost = _cost_estimate(T, B, n_in, C, h1, h2, n_out,
                          xs, ctxs3, w1_x, w1_c, b1, w2, b2, w3, b3)

    # Per-task blocks for x / ctx / out; constant-index full blocks for the
    # shared weights (not re-DMA'd across grid steps).
    in_specs = [
        pl.BlockSpec((1, B, n_in), lambda t: (t, 0, 0)),   # x      (per task)
        pl.BlockSpec((1, 1, C),    lambda t: (t, 0, 0)),   # ctx    (per task)
        pl.BlockSpec((n_in, h1),   lambda t: (0, 0)),      # w1_x   (shared)
        pl.BlockSpec((C, h1),      lambda t: (0, 0)),      # w1_c   (shared)
        pl.BlockSpec((1, h1),      lambda t: (0, 0)),      # b1
        pl.BlockSpec((h1, h2),     lambda t: (0, 0)),      # w2
        pl.BlockSpec((1, h2),      lambda t: (0, 0)),      # b2
        pl.BlockSpec((h2, n_out),  lambda t: (0, 0)),      # w3
        pl.BlockSpec((1, n_out),   lambda t: (0, 0)),      # b3
    ]
    out_specs = pl.BlockSpec((1, B, n_out), lambda t: (t, 0, 0))

    kernel = pl.pallas_call(
        cavia_task_kernel,
        out_shape=jax.ShapeDtypeStruct((T, B, n_out), xs.dtype),
        grid=(T,),
        in_specs=in_specs,
        out_specs=out_specs,
        compiler_params=pltpu.CompilerParams(
            dimension_semantics=("parallel",)),
        cost_estimate=cost,
    )
    return kernel(xs, ctxs3, w1_x, w1_c, b1, w2, b2, w3, b3)


# ----------------------------------------------------------------------------
# Parameter init + pure-JAX reference (PyTorch-equivalent)
# ----------------------------------------------------------------------------

def init_params(key, n_in, num_context_params, n_hidden, n_out):
    """PyTorch-style nn.Linear init (uniform +/- 1/sqrt(fan_in)).

    Weights stored as (in_features, out_features) so the kernel computes x @ W + b.
    """
    dims = [n_in + num_context_params] + list(n_hidden) + [n_out]
    params = {}
    keys = jax.random.split(key, 2 * (len(dims) - 1))
    for i in range(len(dims) - 1):
        fan_in, fan_out = dims[i], dims[i + 1]
        bound = 1.0 / (fan_in ** 0.5)
        params[f"w{i + 1}"] = jax.random.uniform(
            keys[2 * i], (fan_in, fan_out), minval=-bound, maxval=bound,
            dtype=jnp.float32)
        params[f"b{i + 1}"] = jax.random.uniform(
            keys[2 * i + 1], (1, fan_out), minval=-bound, maxval=bound,
            dtype=jnp.float32)
    return params


def reference_forward(x, context_params, params):
    """Pure-JAX reference of CaviaModel.forward (explicit concat, as in PyTorch)."""
    B = x.shape[0]
    h = jnp.concatenate(
        [x, jnp.broadcast_to(context_params[None, :], (B, context_params.shape[0]))],
        axis=1)
    h = jax.nn.relu(h @ params["w1"] + params["b1"])
    h = jax.nn.relu(h @ params["w2"] + params["b2"])
    return h @ params["w3"] + params["b3"]


# ----------------------------------------------------------------------------
# Main
# ----------------------------------------------------------------------------

if __name__ == "__main__":
    # Small shapes consistent with the CAVIA regression MLP.
    B = 64
    n_in = 4
    num_context_params = 4
    n_hidden = [32, 32]
    n_out = 2
    T = 4   # number of tasks for the batched entry point

    key = jax.random.PRNGKey(0)
    k_param, k_x, k_xs, k_ctx = jax.random.split(key, 4)

    params = init_params(k_param, n_in, num_context_params, n_hidden, n_out)

    # --- single-task forward (reset_context_params(): context starts at zero) ---
    x = jax.random.normal(k_x, (B, n_in), dtype=jnp.float32)
    context_params = jnp.zeros((num_context_params,), dtype=jnp.float32)

    y = jax.block_until_ready(jax.jit(cavia_forward)(x, context_params, params))
    y_ref = reference_forward(x, context_params, params)
    assert y.shape == (B, n_out)
    assert jnp.allclose(y, y_ref, atol=1e-5, rtol=1e-5), "single-task mismatch"

    # --- batched multi-task forward (adapted, non-zero per-task contexts) ---
    xs = jax.random.normal(k_xs, (T, B, n_in), dtype=jnp.float32)
    ctxs = 0.1 * jax.random.normal(k_ctx, (T, num_context_params), dtype=jnp.float32)

    ys = jax.block_until_ready(jax.jit(cavia_forward_tasks)(xs, ctxs, params))
    ys_ref = jnp.stack([reference_forward(xs[t], ctxs[t], params) for t in range(T)])
    assert ys.shape == (T, B, n_out)
    assert jnp.allclose(ys, ys_ref, atol=1e-5, rtol=1e-5), "multi-task mismatch"

    print("KERNEL_OK")
</pallas_src>

<mosaic_0001>
module attributes {stable_mosaic.version = 11 : i64} {
  func.func @cavia_single_kernel(%arg0: memref<64x4xf32, #tpu.memory_space<vmem>>, %arg1: memref<1x4xf32, #tpu.memory_space<vmem>>, %arg2: memref<4x32xf32, #tpu.memory_space<vmem>>, %arg3: memref<4x32xf32, #tpu.memory_space<vmem>>, %arg4: memref<1x32xf32, #tpu.memory_space<vmem>>, %arg5: memref<32x32xf32, #tpu.memory_space<vmem>>, %arg6: memref<1x32xf32, #tpu.memory_space<vmem>>, %arg7: memref<32x2xf32, #tpu.memory_space<vmem>>, %arg8: memref<1x2xf32, #tpu.memory_space<vmem>>, %arg9: memref<64x2xf32, #tpu.memory_space<vmem>>) attributes {dimension_semantics = [], scalar_prefetch = 0 : i64, scratch_operands = 0 : i64, tpu.core_type = #tpu.core_type<tc>} {
    %c0 = arith.constant 0 : index
    %c0_0 = arith.constant 0 : index
    %0 = vector.load %arg0[%c0, %c0_0] : memref<64x4xf32, #tpu.memory_space<vmem>>, vector<64x4xf32>
    %c0_1 = arith.constant 0 : index
    %c0_2 = arith.constant 0 : index
    %1 = vector.load %arg1[%c0_1, %c0_2] : memref<1x4xf32, #tpu.memory_space<vmem>>, vector<1x4xf32>
    %c0_3 = arith.constant 0 : index
    %c0_4 = arith.constant 0 : index
    %2 = vector.load %arg2[%c0_3, %c0_4] : memref<4x32xf32, #tpu.memory_space<vmem>>, vector<4x32xf32>
    %c0_5 = arith.constant 0 : index
    %c0_6 = arith.constant 0 : index
    %3 = vector.load %arg3[%c0_5, %c0_6] : memref<4x32xf32, #tpu.memory_space<vmem>>, vector<4x32xf32>
    %c0_7 = arith.constant 0 : index
    %c0_8 = arith.constant 0 : index
    %4 = vector.load %arg4[%c0_7, %c0_8] : memref<1x32xf32, #tpu.memory_space<vmem>>, vector<1x32xf32>
    %c0_9 = arith.constant 0 : index
    %c0_10 = arith.constant 0 : index
    %5 = vector.load %arg5[%c0_9, %c0_10] : memref<32x32xf32, #tpu.memory_space<vmem>>, vector<32x32xf32>
    %c0_11 = arith.constant 0 : index
    %c0_12 = arith.constant 0 : index
    %6 = vector.load %arg6[%c0_11, %c0_12] : memref<1x32xf32, #tpu.memory_space<vmem>>, vector<1x32xf32>
    %c0_13 = arith.constant 0 : index
    %c0_14 = arith.constant 0 : index
    %7 = vector.load %arg7[%c0_13, %c0_14] : memref<32x2xf32, #tpu.memory_space<vmem>>, vector<32x2xf32>
    %c0_15 = arith.constant 0 : index
    %c0_16 = arith.constant 0 : index
    %8 = vector.load %arg8[%c0_15, %c0_16] : memref<1x2xf32, #tpu.memory_space<vmem>>, vector<1x2xf32>
    %cst = arith.constant dense<0.000000e+00> : vector<1x32xf32>
    %9 = tpu.matmul %1, %3, %cst {dimension_numbers = #tpu.dot_dimension_numbers<[1], [0], [0], [1], [0, 0, 1, 1], [], []>} : vector<1x4xf32>, vector<4x32xf32>, vector<1x32xf32> -> vector<1x32xf32>
    %10 = arith.addf %9, %4 : vector<1x32xf32>
    %cst_17 = arith.constant dense<0.000000e+00> : vector<64x32xf32>
    %11 = tpu.matmul %0, %2, %cst_17 {dimension_numbers = #tpu.dot_dimension_numbers<[1], [0], [0], [1], [0, 0, 1, 1], [], []>} : vector<64x4xf32>, vector<4x32xf32>, vector<64x32xf32> -> vector<64x32xf32>
    %12 = vector.broadcast %10 : vector<1x32xf32> to vector<64x32xf32>
    %13 = arith.addf %11, %12 : vector<64x32xf32>
    %cst_18 = arith.constant 0.000000e+00 : f32
    %14 = vector.broadcast %cst_18 : f32 to vector<64x32xf32>
    %15 = arith.maximumf %13, %14 : vector<64x32xf32>
    %cst_19 = arith.constant dense<0.000000e+00> : vector<64x32xf32>
    %16 = tpu.matmul %15, %5, %cst_19 {dimension_numbers = #tpu.dot_dimension_numbers<[1], [0], [0], [1], [0, 0, 1, 1], [], []>} : vector<64x32xf32>, vector<32x32xf32>, vector<64x32xf32> -> vector<64x32xf32>
    %17 = vector.broadcast %6 : vector<1x32xf32> to vector<64x32xf32>
    %18 = arith.addf %16, %17 : vector<64x32xf32>
    %cst_20 = arith.constant 0.000000e+00 : f32
    %19 = vector.broadcast %cst_20 : f32 to vector<64x32xf32>
    %20 = arith.maximumf %18, %19 : vector<64x32xf32>
    %cst_21 = arith.constant dense<0.000000e+00> : vector<64x2xf32>
    %21 = tpu.matmul %20, %7, %cst_21 {dimension_numbers = #tpu.dot_dimension_numbers<[1], [0], [0], [1], [0, 0, 1, 1], [], []>} : vector<64x32xf32>, vector<32x2xf32>, vector<64x2xf32> -> vector<64x2xf32>
    %22 = vector.broadcast %8 : vector<1x2xf32> to vector<64x2xf32>
    %23 = arith.addf %21, %22 : vector<64x2xf32>
    %c0_22 = arith.constant 0 : index
    %c0_23 = arith.constant 0 : index
    %24 = vector.load %arg9[%c0_22, %c0_23] : memref<64x2xf32, #tpu.memory_space<vmem>>, vector<64x2xf32>
    tpu.vector_store %arg9[%c0_22, %c0_23], %23 {strides = array<i32>} : memref<64x2xf32, #tpu.memory_space<vmem>>, vector<64x2xf32>,
    return
  }
}

</mosaic_0001>

<llo_original>
// kernel: cavia_forward.1
$region0: #{cavia_forward.1}
  #allocation0 [shape = 'u32[]', space=smem, size = 0x4, offset = 0x4, fixed_abs, tag = 'smem constant byte address 0x4 - core index']
  #allocation1 [shape = 'u32[144,128]{1,0:T(1,128)}', space=vmem, size = 0x12000, scoped, tag = 'internal scratch']
  %s0 = inlined_call_operand.vmem [shape: f32[64,4], index: 0, kind: input, shape index: {}]
  %s1 = inlined_call_operand.vmem [shape: f32[1,4], index: 1, kind: input, shape index: {}]
  %s2 = inlined_call_operand.vmem [shape: f32[4,32], index: 2, kind: input, shape index: {}]
  %s3 = inlined_call_operand.vmem [shape: f32[4,32], index: 3, kind: input, shape index: {}]
  %s4 = inlined_call_operand.vmem [shape: f32[1,32], index: 4, kind: input, shape index: {}]
  %s5 = inlined_call_operand.vmem [shape: f32[32,32], index: 5, kind: input, shape index: {}]
  %s6 = inlined_call_operand.vmem [shape: f32[1,32], index: 6, kind: input, shape index: {}]
  %s7 = inlined_call_operand.vmem [shape: f32[32,2], index: 7, kind: input, shape index: {}]
  %s8 = inlined_call_operand.vmem [shape: f32[1,2], index: 8, kind: input, shape index: {}]
  %s9 = inlined_call_operand.vmem [shape: f32[64,2], index: 9, kind: output, shape index: {}]
  %s10 = sld [smem:[#allocation0]]
  $region46: #{cavia_forward.1} parent=0
    _
  %s12 = ssub.s32 1, %s10
  %s13 = scalar_select 0, %s12, %s10
  // Predicated region
  $region2: #{cavia_forward.1} parent=0 // pred_check
    _
  $region3: #{cavia_forward.1} parent=0 // pred_check_branch
    %15 = sbr.rel (0) target = $region5
  $region4: #{cavia_forward.1} parent=0 // pred_region
    _
  $region5: #{cavia_forward.1} parent=0 // pred_fallthru
    _
  // Predicated region
  $region6: #{cavia_forward.1} parent=0 // pred_check
    _
  $region7: #{cavia_forward.1} parent=0 // pred_check_branch
    %17 = sbr.rel (0) target = $region9
  $region8: #{cavia_forward.1} parent=0 // pred_region
    _
  $region9: #{cavia_forward.1} parent=0 // pred_fallthru
    _
  // Predicated region
  $region10: #{cavia_forward.1} parent=0 // pred_check
    _
  $region11: #{cavia_forward.1} parent=0 // pred_check_branch
    %19 = sbr.rel (0) target = $region13
  $region12: #{cavia_forward.1} parent=0 // pred_region
    _
  $region13: #{cavia_forward.1} parent=0 // pred_fallthru
    _
  // Predicated region
  $region14: #{cavia_forward.1} parent=0 // pred_check
    _
  $region15: #{cavia_forward.1} parent=0 // pred_check_branch
    %21 = sbr.rel (0) target = $region17
  $region16: #{cavia_forward.1} parent=0 // pred_region
    _
  $region17: #{cavia_forward.1} parent=0 // pred_fallthru
    _
  // Predicated region
  $region18: #{cavia_forward.1} parent=0 // pred_check
    _
  $region19: #{cavia_forward.1} parent=0 // pred_check_branch
    %23 = sbr.rel (0) target = $region21
  $region20: #{cavia_forward.1} parent=0 // pred_region
    _
  $region21: #{cavia_forward.1} parent=0 // pred_fallthru
    _
  // Predicated region
  $region22: #{cavia_forward.1} parent=0 // pred_check
    _
  $region23: #{cavia_forward.1} parent=0 // pred_check_branch
    %25 = sbr.rel (0) target = $region25
  $region24: #{cavia_forward.1} parent=0 // pred_region
    _
  $region25: #{cavia_forward.1} parent=0 // pred_fallthru
    _
  // Predicated region
  $region26: #{cavia_forward.1} parent=0 // pred_check
    _
  $region27: #{cavia_forward.1} parent=0 // pred_check_branch
    %27 = sbr.rel (0) target = $region29
  $region28: #{cavia_forward.1} parent=0 // pred_region
    _
  $region29: #{cavia_forward.1} parent=0 // pred_fallthru
    _
  // Predicated region
  $region30: #{cavia_forward.1} parent=0 // pred_check
    _
  $region31: #{cavia_forward.1} parent=0 // pred_check_branch
    %29 = sbr.rel (0) target = $region33
  $region32: #{cavia_forward.1} parent=0 // pred_region
    _
  $region33: #{cavia_forward.1} parent=0 // pred_fallthru
    _
  // Predicated region
  $region34: #{cavia_forward.1} parent=0 // pred_check
    _
  $region35: #{cavia_forward.1} parent=0 // pred_check_branch
    %31 = sbr.rel (0) target = $region37
  $region36: #{cavia_forward.1} parent=0 // pred_region
    _
  $region37: #{cavia_forward.1} parent=0 // pred_fallthru
    _
  %v32 = vld [vmem:[%s0] sm:$0xff]
  %v33 = vld [vmem:[%s0 + $0x8] sm:$0xff]
  %v34 = vld [vmem:[%s0 + $0x10] sm:$0xff]
  %v35 = vld [vmem:[%s0 + $0x18] sm:$0xff]
  %v36 = vld [vmem:[%s0 + $0x20] sm:$0xff]
  %v37 = vld [vmem:[%s0 + $0x28] sm:$0xff]
  %v38 = vld [vmem:[%s0 + $0x30] sm:$0xff]
  %v39 = vld [vmem:[%s0 + $0x38] sm:$0xff]
  %v40 = vld [vmem:[%s1] sm:$0x1]
  %v41 = vld [vmem:[%s2] sm:$0xf]
  %v42 = vld [vmem:[%s3] sm:$0xf]
  %v43 = vld [vmem:[%s4] sm:$0x1]
  %v44 = vld [vmem:[%s5] sm:$0xff]
  %v45 = vld [vmem:[%s5 + $0x8] sm:$0xff]
  %v46 = vld [vmem:[%s5 + $0x10] sm:$0xff]
  %v47 = vld [vmem:[%s5 + $0x18] sm:$0xff]
  %v48 = vld [vmem:[%s6] sm:$0x1]
  %v49 = vld [vmem:[%s7] sm:$0xff]
  %v50 = vld [vmem:[%s7 + $0x8] sm:$0xff]
  %v51 = vld [vmem:[%s7 + $0x10] sm:$0xff]
  %v52 = vld [vmem:[%s7 + $0x18] sm:$0xff]
  %v53 = vld [vmem:[%s8] sm:$0x1]
  %vm54 = vcmask 31744
  %v56 = vsel %vm54, %v40, 0
  %vm58 = vcmask 1043456
  %v60 = vsel %vm58, %v42, 0
  %62 = vmatprep.subr.mxu0 0.0
  %63 = vmatpush1.msra.mxu0 0.0
  %64 = vmatprep.subr.mxu0 0.0
  %65 = vmatpush1.msra.mxu0 0.0
  %66 = vmatprep.subr.mxu0 0.0
  %67 = vmatpush1.msra.mxu0 0.0
  %68 = vmatprep.subr.mxu0 0.0
  %69 = vmatpush1.msra.mxu0 0.0
  %70 = vmatprep.subr.mxu0 0.0
  %71 = vmatpush1.msra.mxu0 0.0
  %72 = vmatprep.subr.mxu0 0.0
  %73 = vmatpush1.msra.mxu0 0.0
  %74 = vmatprep.subr.mxu0 0.0
  %75 = vmatpush1.msra.mxu0 0.0
  %76 = vmatprep.subr.mxu0 0.0
  %77 = vmatpush1.msra.mxu0 0.0
  %78 = vmatprep.subr.mxu0 0.0
  %79 = vmatpush1.msra.mxu0 0.0
  %80 = vmatprep.subr.mxu0 0.0
  %81 = vmatpush1.msra.mxu0 0.0
  %82 = vmatprep.subr.mxu0 0.0
  %83 = vmatpush1.msra.mxu0 0.0
  %84 = vmatprep.subr.mxu0 0.0
  %85 = vmatpush1.msra.mxu0 0.0
  %86 = vmatprep.subr.mxu0 0.0
  %87 = vmatpush1.msra.mxu0 0.0
  %88 = vmatprep.subr.mxu0 0.0
  %89 = vmatpush1.msra.mxu0 0.0
  %90 = vmatprep.subr.mxu0 0.0
  %91 = vmatpush1.msra.mxu0 0.0
  %92 = vmatprep.subr.mxu0 0.0
  %93 = vmatpush1.msra.mxu0 %v60
  %94 = vmatprep.subr.mxu0 0.0
  %95 = vmatpush2.msra.mxu0 0.0
  %96 = vmatprep.subr.mxu0 0.0
  %97 = vmatpush2.msra.mxu0 0.0
  %98 = vmatprep.subr.mxu0 0.0
  %99 = vmatpush2.msra.mxu0 0.0
  %100 = vmatprep.subr.mxu0 0.0
  %101 = vmatpush2.msra.mxu0 0.0
  %102 = vmatprep.subr.mxu0 0.0
  %103 = vmatpush2.msra.mxu0 0.0
  %104 = vmatprep.subr.mxu0 0.0
  %105 = vmatpush2.msra.mxu0 0.0
  %106 = vmatprep.subr.mxu0 0.0
  %107 = vmatpush2.msra.mxu0 0.0
  %108 = vmatprep.subr.mxu0 0.0
  %109 = vmatpush2.msra.mxu0 0.0
  %110 = vmatprep.subr.mxu0 0.0
  %111 = vmatpush2.msra.mxu0 0.0
  %112 = vmatprep.subr.mxu0 0.0
  %113 = vmatpush2.msra.mxu0 0.0
  %114 = vmatprep.subr.mxu0 0.0
  %115 = vmatpush2.msra.mxu0 0.0
  %116 = vmatprep.subr.mxu0 0.0
  %117 = vmatpush2.msra.mxu0 0.0
  %118 = vmatprep.subr.mxu0 0.0
  %119 = vmatpush2.msra.mxu0 0.0
  %120 = vmatprep.subr.mxu0 0.0
  %121 = vmatpush2.msra.mxu0 0.0
  %122 = vmatprep.subr.mxu0 0.0
  %123 = vmatpush2.msra.mxu0 0.0
  %124 = vmatprep.subr.mxu0 0.0
  %125 = vmatpush2.msra.mxu0 0.0
  %126 = vmatprep.mubr.f32.mxu0 0.0
  %127 = vmatmul.mubr.f32.gmra.mxu0 %v56
  %v128 = vpop.f32.mrf.mxu0
  %v129 = vadd.f32 %v43, %v128
  %v130 = vpop.f32.mrf.mxu0
  %131 = vdwg.mxu0
  %v132 = vlaneseq
  %v133 = vshrl.u32 %v132, 7
  %v134 = vsub.s32 0, %v133
  %v135 = vrot.slane %v129, %v134
  %v137 = vsel %vm54, %v32, 0
  %v140 = vsel %vm54, %v33, 0
  %v143 = vsel %vm54, %v34, 0
  %v146 = vsel %vm54, %v35, 0
  %v149 = vsel %vm54, %v36, 0
  %v152 = vsel %vm54, %v37, 0
  %v155 = vsel %vm54, %v38, 0
  %v158 = vsel %vm54, %v39, 0
  %v161 = vsel %vm58, %v41, 0
  %163 = vmatprep.subr.mxu0 0.0
  %164 = vmatpush1.msra.mxu0 0.0
  %165 = vmatprep.subr.mxu0 0.0
  %166 = vmatpush1.msra.mxu0 0.0
  %167 = vmatprep.subr.mxu0 0.0
  %168 = vmatpush1.msra.mxu0 0.0
  %169 = vmatprep.subr.mxu0 0.0
  %170 = vmatpush1.msra.mxu0 0.0
  %171 = vmatprep.subr.mxu0 0.0
  %172 = vmatpush1.msra.mxu0 0.0
  %173 = vmatprep.subr.mxu0 0.0
  %174 = vmatpush1.msra.mxu0 0.0
  %175 = vmatprep.subr.mxu0 0.0
  %176 = vmatpush1.msra.mxu0 0.0
  %177 = vmatprep.subr.mxu0 0.0
  %178 = vmatpush1.msra.mxu0 0.0
  %179 = vmatprep.subr.mxu0 0.0
  %180 = vmatpush1.msra.mxu0 0.0
  %181 = vmatprep.subr.mxu0 0.0
  %182 = vmatpush1.msra.mxu0 0.0
  %183 = vmatprep.subr.mxu0 0.0
  %184 = vmatpush1.msra.mxu0 0.0
  %185 = vmatprep.subr.mxu0 0.0
  %186 = vmatpush1.msra.mxu0 0.0
  %187 = vmatprep.subr.mxu0 0.0
  %188 = vmatpush1.msra.mxu0 0.0
  %189 = vmatprep.subr.mxu0 0.0
  %190 = vmatpush1.msra.mxu0 0.0
  %191 = vmatprep.subr.mxu0 0.0
  %192 = vmatpush1.msra.mxu0 0.0
  %193 = vmatprep.subr.mxu0 0.0
  %194 = vmatpush1.msra.mxu0 %v161
  %195 = vmatprep.subr.mxu0 0.0
  %196 = vmatpush2.msra.mxu0 0.0
  %197 = vmatprep.subr.mxu0 0.0
  %198 = vmatpush2.msra.mxu0 0.0
  %199 = vmatprep.subr.mxu0 0.0
  %200 = vmatpush2.msra.mxu0 0.0
  %201 = vmatprep.subr.mxu0 0.0
  %202 = vmatpush2.msra.mxu0 0.0
  %203 = vmatprep.subr.mxu0 0.0
  %204 = vmatpush2.msra.mxu0 0.0
  %205 = vmatprep.subr.mxu0 0.0
  %206 = vmatpush2.msra.mxu0 0.0
  %207 = vmatprep.subr.mxu0 0.0
  %208 = vmatpush2.msra.mxu0 0.0
  %209 = vmatprep.subr.mxu0 0.0
  %210 = vmatpush2.msra.mxu0 0.0
  %211 = vmatprep.subr.mxu0 0.0
  %212 = vmatpush2.msra.mxu0 0.0
  %213 = vmatprep.subr.mxu0 0.0
  %214 = vmatpush2.msra.mxu0 0.0
  %215 = vmatprep.subr.mxu0 0.0
  %216 = vmatpush2.msra.mxu0 0.0
  %217 = vmatprep.subr.mxu0 0.0
  %218 = vmatpush2.msra.mxu0 0.0
  %219 = vmatprep.subr.mxu0 0.0
  %220 = vmatpush2.msra.mxu0 0.0
  %221 = vmatprep.subr.mxu0 0.0
  %222 = vmatpush2.msra.mxu0 0.0
  %223 = vmatprep.subr.mxu0 0.0
  %224 = vmatpush2.msra.mxu0 0.0
  %225 = vmatprep.subr.mxu0 0.0
  %226 = vmatpush2.msra.mxu0 0.0
  %227 = vmatprep.mubr.f32.mxu0 0.0
  %228 = vmatmul.mubr.f32.gmra.mxu0 %v137
  %v229 = vpop.f32.mrf.mxu0
  %v230 = vadd.f32 %v135, %v229
  %v231 = vpop.f32.mrf.mxu0
  %232 = vmatprep.mubr.f32.mxu0 0.0
  %233 = vmatmul.mubr.f32.gmra.mxu0 %v140
  %v234 = vpop.f32.mrf.mxu0
  %v235 = vadd.f32 %v135, %v234
  %v236 = vpop.f32.mrf.mxu0
  %237 = vmatprep.mubr.f32.mxu0 0.0
  %238 = vmatmul.mubr.f32.gmra.mxu0 %v143
  %v239 = vpop.f32.mrf.mxu0
  %v240 = vadd.f32 %v135, %v239
  %v241 = vpop.f32.mrf.mxu0
  %242 = vmatprep.mubr.f32.mxu0 0.0
  %243 = vmatmul.mubr.f32.gmra.mxu0 %v146
  %v244 = vpop.f32.mrf.mxu0
  %v245 = vadd.f32 %v135, %v244
  %v246 = vpop.f32.mrf.mxu0
  %247 = vmatprep.mubr.f32.mxu0 0.0
  %248 = vmatmul.mubr.f32.gmra.mxu0 %v149
  %v249 = vpop.f32.mrf.mxu0
  %v250 = vadd.f32 %v135, %v249
  %v251 = vpop.f32.mrf.mxu0
  %252 = vmatprep.mubr.f32.mxu0 0.0
  %253 = vmatmul.mubr.f32.gmra.mxu0 %v152
  %v254 = vpop.f32.mrf.mxu0
  %v255 = vadd.f32 %v135, %v254
  %v256 = vpop.f32.mrf.mxu0
  %257 = vmatprep.mubr.f32.mxu0 0.0
  %258 = vmatmul.mubr.f32.gmra.mxu0 %v155
  %v259 = vpop.f32.mrf.mxu0
  %v260 = vadd.f32 %v135, %v259
  %v261 = vpop.f32.mrf.mxu0
  %262 = vmatprep.mubr.f32.mxu0 0.0
  %263 = vmatmul.mubr.f32.gmra.mxu0 %v158
  %v264 = vpop.f32.mrf.mxu0
  %v265 = vadd.f32 %v135, %v264
  %v266 = vpop.f32.mrf.mxu0
  %267 = vdwg.mxu0
  %v268 = vmax.f32 %v230, 0.0
  %v269 = vmax.f32 %v235, 0.0
  %v270 = vmax.f32 %v240, 0.0
  %v271 = vmax.f32 %v245, 0.0
  %v272 = vmax.f32 %v250, 0.0
  %v273 = vmax.f32 %v255, 0.0
  %v274 = vmax.f32 %v260, 0.0
  %v275 = vmax.f32 %v265, 0.0
  %v277 = vlaneseq
  %v278 = vshrl.u32 %v277, 7
  %v279 = vsub.s32 0, %v278
  %v280 = vrot.slane %v48, %v279
  %vm282 = vcmask 261120
  %v284 = vsel %vm282, %v268, 0
  %v287 = vsel %vm282, %v269, 0
  %v290 = vsel %vm282, %v270, 0
  %v293 = vsel %vm282, %v271, 0
  %v296 = vsel %vm282, %v272, 0
  %v299 = vsel %vm282, %v273, 0
  %v302 = vsel %vm282, %v274, 0
  %v305 = vsel %vm282, %v275, 0
  %307 = vmatprep.subr.mxu0 0.0
  %308 = vmatpush1.msra.mxu0 0.0
  %309 = vmatprep.subr.mxu0 0.0
  %310 = vmatpush1.msra.mxu0 0.0
  %311 = vmatprep.subr.mxu0 0.0
  %312 = vmatpush1.msra.mxu0 0.0
  %313 = vmatprep.subr.mxu0 0.0
  %314 = vmatpush1.msra.mxu0 0.0
  %315 = vmatprep.subr.mxu0 0.0
  %316 = vmatpush1.msra.mxu0 0.0
  %317 = vmatprep.subr.mxu0 0.0
  %318 = vmatpush1.msra.mxu0 0.0
  %319 = vmatprep.subr.mxu0 0.0
  %320 = vmatpush1.msra.mxu0 0.0
  %321 = vmatprep.subr.mxu0 0.0
  %322 = vmatpush1.msra.mxu0 0.0
  %323 = vmatprep.subr.mxu0 0.0
  %324 = vmatpush1.msra.mxu0 0.0
  %325 = vmatprep.subr.mxu0 0.0
  %326 = vmatpush1.msra.mxu0 0.0
  %327 = vmatprep.subr.mxu0 0.0
  %328 = vmatpush1.msra.mxu0 0.0
  %329 = vmatprep.subr.mxu0 0.0
  %330 = vmatpush1.msra.mxu0 0.0
  %331 = vmatprep.subr.mxu0 0.0
  %332 = vmatpush1.msra.mxu0 %v47
  %333 = vmatprep.subr.mxu0 0.0
  %334 = vmatpush1.msra.mxu0 %v46
  %335 = vmatprep.subr.mxu0 0.0
  %336 = vmatpush1.msra.mxu0 %v45
  %337 = vmatprep.subr.mxu0 0.0
  %338 = vmatpush1.msra.mxu0 %v44
  %339 = vmatprep.subr.mxu0 0.0
  %340 = vmatpush2.msra.mxu0 0.0
  %341 = vmatprep.subr.mxu0 0.0
  %342 = vmatpush2.msra.mxu0 0.0
  %343 = vmatprep.subr.mxu0 0.0
  %344 = vmatpush2.msra.mxu0 0.0
  %345 = vmatprep.subr.mxu0 0.0
  %346 = vmatpush2.msra.mxu0 0.0
  %347 = vmatprep.subr.mxu0 0.0
  %348 = vmatpush2.msra.mxu0 0.0
  %349 = vmatprep.subr.mxu0 0.0
  %350 = vmatpush2.msra.mxu0 0.0
  %351 = vmatprep.subr.mxu0 0.0
  %352 = vmatpush2.msra.mxu0 0.0
  %353 = vmatprep.subr.mxu0 0.0
  %354 = vmatpush2.msra.mxu0 0.0
  %355 = vmatprep.subr.mxu0 0.0
  %356 = vmatpush2.msra.mxu0 0.0
  %357 = vmatprep.subr.mxu0 0.0
  %358 = vmatpush2.msra.mxu0 0.0
  %359 = vmatprep.subr.mxu0 0.0
  %360 = vmatpush2.msra.mxu0 0.0
  %361 = vmatprep.subr.mxu0 0.0
  %362 = vmatpush2.msra.mxu0 0.0
  %363 = vmatprep.subr.mxu0 0.0
  %364 = vmatpush2.msra.mxu0 0.0
  %365 = vmatprep.subr.mxu0 0.0
  %366 = vmatpush2.msra.mxu0 0.0
  %367 = vmatprep.subr.mxu0 0.0
  %368 = vmatpush2.msra.mxu0 0.0
  %369 = vmatprep.subr.mxu0 0.0
  %370 = vmatpush2.msra.mxu0 0.0
  %371 = vmatprep.mubr.f32.mxu0 0.0
  %372 = vmatmul.mubr.f32.gmra.mxu0 %v284
  %v373 = vpop.f32.mrf.mxu0
  %v374 = vadd.f32 %v280, %v373
  %v375 = vpop.f32.mrf.mxu0
  %376 = vmatprep.mubr.f32.mxu0 0.0
  %377 = vmatmul.mubr.f32.gmra.mxu0 %v287
  %v378 = vpop.f32.mrf.mxu0
  %v379 = vadd.f32 %v280, %v378
  %v380 = vpop.f32.mrf.mxu0
  %381 = vmatprep.mubr.f32.mxu0 0.0
  %382 = vmatmul.mubr.f32.gmra.mxu0 %v290
  %v383 = vpop.f32.mrf.mxu0
  %v384 = vadd.f32 %v280, %v383
  %v385 = vpop.f32.mrf.mxu0
  %386 = vmatprep.mubr.f32.mxu0 0.0
  %387 = vmatmul.mubr.f32.gmra.mxu0 %v293
  %v388 = vpop.f32.mrf.mxu0
  %v389 = vadd.f32 %v280, %v388
  %v390 = vpop.f32.mrf.mxu0
  %391 = vmatprep.mubr.f32.mxu0 0.0
  %392 = vmatmul.mubr.f32.gmra.mxu0 %v296
  %v393 = vpop.f32.mrf.mxu0
  %v394 = vadd.f32 %v280, %v393
  %v395 = vpop.f32.mrf.mxu0
  %396 = vmatprep.mubr.f32.mxu0 0.0
  %397 = vmatmul.mubr.f32.gmra.mxu0 %v299
  %v398 = vpop.f32.mrf.mxu0
  %v399 = vadd.f32 %v280, %v398
  %v400 = vpop.f32.mrf.mxu0
  %401 = vmatprep.mubr.f32.mxu0 0.0
  %402 = vmatmul.mubr.f32.gmra.mxu0 %v302
  %v403 = vpop.f32.mrf.mxu0
  %v404 = vadd.f32 %v280, %v403
  %v405 = vpop.f32.mrf.mxu0
  %406 = vmatprep.mubr.f32.mxu0 0.0
  %407 = vmatmul.mubr.f32.gmra.mxu0 %v305
  %v408 = vpop.f32.mrf.mxu0
  %v409 = vadd.f32 %v280, %v408
  %v410 = vpop.f32.mrf.mxu0
  %411 = vdwg.mxu0
  %v412 = vmax.f32 %v374, 0.0
  %v413 = vmax.f32 %v379, 0.0
  %v414 = vmax.f32 %v384, 0.0
  %v415 = vmax.f32 %v389, 0.0
  %v416 = vmax.f32 %v394, 0.0
  %v417 = vmax.f32 %v399, 0.0
  %v418 = vmax.f32 %v404, 0.0
  %v419 = vmax.f32 %v409, 0.0
  %v421 = vlaneseq
  %v422 = vshrl.u32 %v421, 7
  %v423 = vsub.s32 0, %v422
  %v424 = vrot.slane %v53, %v423
  %v427 = vsel %vm282, %v412, 0
  %v430 = vsel %vm282, %v413, 0
  %v433 = vsel %vm282, %v414, 0
  %v436 = vsel %vm282, %v415, 0
  %v439 = vsel %vm282, %v416, 0
  %v442 = vsel %vm282, %v417, 0
  %v445 = vsel %vm282, %v418, 0
  %v448 = vsel %vm282, %v419, 0
  %450 = vmatprep.subr.mxu0 0.0
  %451 = vmatpush1.msra.mxu0 0.0
  %452 = vmatprep.subr.mxu0 0.0
  %453 = vmatpush1.msra.mxu0 0.0
  %454 = vmatprep.subr.mxu0 0.0
  %455 = vmatpush1.msra.mxu0 0.0
  %456 = vmatprep.subr.mxu0 0.0
  %457 = vmatpush1.msra.mxu0 0.0
  %458 = vmatprep.subr.mxu0 0.0
  %459 = vmatpush1.msra.mxu0 0.0
  %460 = vmatprep.subr.mxu0 0.0
  %461 = vmatpush1.msra.mxu0 0.0
  %462 = vmatprep.subr.mxu0 0.0
  %463 = vmatpush1.msra.mxu0 0.0
  %464 = vmatprep.subr.mxu0 0.0
  %465 = vmatpush1.msra.mxu0 0.0
  %466 = vmatprep.subr.mxu0 0.0
  %467 = vmatpush1.msra.mxu0 0.0
  %468 = vmatprep.subr.mxu0 0.0
  %469 = vmatpush1.msra.mxu0 0.0
  %470 = vmatprep.subr.mxu0 0.0
  %471 = vmatpush1.msra.mxu0 0.0
  %472 = vmatprep.subr.mxu0 0.0
  %473 = vmatpush1.msra.mxu0 0.0
  %474 = vmatprep.subr.mxu0 0.0
  %475 = vmatpush1.msra.mxu0 %v52
  %476 = vmatprep.subr.mxu0 0.0
  %477 = vmatpush1.msra.mxu0 %v51
  %478 = vmatprep.subr.mxu0 0.0
  %479 = vmatpush1.msra.mxu0 %v50
  %480 = vmatprep.subr.mxu0 0.0
  %481 = vmatpush1.msra.mxu0 %v49
  %482 = vmatprep.subr.mxu0 0.0
  %483 = vmatpush2.msra.mxu0 0.0
  %484 = vmatprep.subr.mxu0 0.0
  %485 = vmatpush2.msra.mxu0 0.0
  %486 = vmatprep.subr.mxu0 0.0
  %487 = vmatpush2.msra.mxu0 0.0
  %488 = vmatprep.subr.mxu0 0.0
  %489 = vmatpush2.msra.mxu0 0.0
  %490 = vmatprep.subr.mxu0 0.0
  %491 = vmatpush2.msra.mxu0 0.0
  %492 = vmatprep.subr.mxu0 0.0
  %493 = vmatpush2.msra.mxu0 0.0
  %494 = vmatprep.subr.mxu0 0.0
  %495 = vmatpush2.msra.mxu0 0.0
  %496 = vmatprep.subr.mxu0 0.0
  %497 = vmatpush2.msra.mxu0 0.0
  %498 = vmatprep.subr.mxu0 0.0
  %499 = vmatpush2.msra.mxu0 0.0
  %500 = vmatprep.subr.mxu0 0.0
  %501 = vmatpush2.msra.mxu0 0.0
  %502 = vmatprep.subr.mxu0 0.0
  %503 = vmatpush2.msra.mxu0 0.0
  %504 = vmatprep.subr.mxu0 0.0
  %505 = vmatpush2.msra.mxu0 0.0
  %506 = vmatprep.subr.mxu0 0.0
  %507 = vmatpush2.msra.mxu0 0.0
  %508 = vmatprep.subr.mxu0 0.0
  %509 = vmatpush2.msra.mxu0 0.0
  %510 = vmatprep.subr.mxu0 0.0
  %511 = vmatpush2.msra.mxu0 0.0
  %512 = vmatprep.subr.mxu0 0.0
  %513 = vmatpush2.msra.mxu0 0.0
  %514 = vmatprep.mubr.f32.mxu0 0.0
  %515 = vmatmul.mubr.f32.gmra.mxu0 %v427
  %v516 = vpop.f32.mrf.mxu0
  %v517 = vadd.f32 %v424, %v516
  %v518 = vpop.f32.mrf.mxu0
  %519 = vmatprep.mubr.f32.mxu0 0.0
  %520 = vmatmul.mubr.f32.gmra.mxu0 %v430
  %v521 = vpop.f32.mrf.mxu0
  %v522 = vadd.f32 %v424, %v521
  %v523 = vpop.f32.mrf.mxu0
  %524 = vmatprep.mubr.f32.mxu0 0.0
  %525 = vmatmul.mubr.f32.gmra.mxu0 %v433
  %v526 = vpop.f32.mrf.mxu0
  %v527 = vadd.f32 %v424, %v526
  %v528 = vpop.f32.mrf.mxu0
  %529 = vmatprep.mubr.f32.mxu0 0.0
  %530 = vmatmul.mubr.f32.gmra.mxu0 %v436
  %v531 = vpop.f32.mrf.mxu0
  %v532 = vadd.f32 %v424, %v531
  %v533 = vpop.f32.mrf.mxu0
  %534 = vmatprep.mubr.f32.mxu0 0.0
  %535 = vmatmul.mubr.f32.gmra.mxu0 %v439
  %v536 = vpop.f32.mrf.mxu0
  %v537 = vadd.f32 %v424, %v536
  %v538 = vpop.f32.mrf.mxu0
  %539 = vmatprep.mubr.f32.mxu0 0.0
  %540 = vmatmul.mubr.f32.gmra.mxu0 %v442
  %v541 = vpop.f32.mrf.mxu0
  %v542 = vadd.f32 %v424, %v541
  %v543 = vpop.f32.mrf.mxu0
  %544 = vmatprep.mubr.f32.mxu0 0.0
  %545 = vmatmul.mubr.f32.gmra.mxu0 %v445
  %v546 = vpop.f32.mrf.mxu0
  %v547 = vadd.f32 %v424, %v546
  %v548 = vpop.f32.mrf.mxu0
  %549 = vmatprep.mubr.f32.mxu0 0.0
  %550 = vmatmul.mubr.f32.gmra.mxu0 %v448
  %v551 = vpop.f32.mrf.mxu0
  %v552 = vadd.f32 %v424, %v551
  %v553 = vpop.f32.mrf.mxu0
  %554 = vdwg.mxu0
  %vm555 = vcmask 15360
  %556 = vst.msk [vmem:[%s9] sm:$0xff] %vm555, %v517
  %557 = vst.msk [vmem:[%s9 + $0x8] sm:$0xff] %vm555, %v522
  %558 = vst.msk [vmem:[%s9 + $0x10] sm:$0xff] %vm555, %v527
  %559 = vst.msk [vmem:[%s9 + $0x18] sm:$0xff] %vm555, %v532
  %560 = vst.msk [vmem:[%s9 + $0x20] sm:$0xff] %vm555, %v537
  %561 = vst.msk [vmem:[%s9 + $0x28] sm:$0xff] %vm555, %v542
  %562 = vst.msk [vmem:[%s9 + $0x30] sm:$0xff] %vm555, %v547
  %563 = vst.msk [vmem:[%s9 + $0x38] sm:$0xff] %vm555, %v552
  // Predicated region
  $region38: #{cavia_forward.1} parent=0 // pred_check
    _
  $region39: #{cavia_forward.1} parent=0 // pred_check_branch
    %565 = sbr.rel (0) target = $region41
  $region40: #{cavia_forward.1} parent=0 // pred_region
    _
  $region41: #{cavia_forward.1} parent=0 // pred_fallthru
    _
  // Predicated region
  $region42: #{cavia_forward.1} parent=0 // pred_check
    _
  $region43: #{cavia_forward.1} parent=0 // pred_check_branch
    %567 = sbr.rel (0) target = $region45
  $region44: #{cavia_forward.1} parent=0 // pred_region
    _
  $region45: #{cavia_forward.1} parent=0 // pred_fallthru
    _

</llo_original>
